<compile_context>
chip_gen: v6e
topology: v6e:2x2x1
jax: 0.10.0
libtpu: 0.0.40
codegen_flags: <defaults>
</compile_context>

<pallas_src>
import numpy as np
import jax
import jax.numpy as jnp
from jax.experimental import pallas as pl
from jax.experimental.pallas import tpu as pltpu

BN_EPS = 1e-5
COMPUTE_DTYPE = jnp.bfloat16   # MXU operand dtype (accumulation is always f32)
LANE = 128
SUBLANE = 8


def _round_up(x, m):
    return (x + m - 1) // m * m


# ----------------------------------------------------------------------------
# Fused kernel: deep MLP (BN pre-folded) + wide add + sigmoid per batch tile.
# ----------------------------------------------------------------------------
def _make_fused_kernel(num_hidden):
    def kernel(*refs):
        x_ref, wide_ref = refs[0], refs[1]
        o_ref = refs[-1]
        prm = refs[2:-1]                  # w0, b0, ..., w_{L-1}, b_{L-1}, w_out_row

        h = x_ref[...]                    # (TB, D0_pad) bf16
        for l in range(num_hidden):
            w = prm[2 * l][...]           # (Din_pad, Dout_pad) bf16, resident
            b = prm[2 * l + 1][...]       # (1, Dout_pad)        f32
            acc = jnp.dot(h, w, preferred_element_type=jnp.float32)   # MXU
            h = jnp.maximum(acc + b, 0.0).astype(COMPUTE_DTYPE)       # VPU

        # Output layer (out_features == 1): multiply + lane reduce on the XLU
        # instead of an N=1 MXU matmul. Output-layer bias is folded into wide.
        w_out = prm[2 * num_hidden][...]                              # (1, Dlast_pad) f32
        deep = jnp.sum(h.astype(jnp.float32) * w_out, axis=-1, keepdims=True)
        logit = deep + wide_ref[...]                                  # (TB, 1) f32
        o_ref[...] = 1.0 / (1.0 + jnp.exp(-logit))                    # EUP sigmoid
    return kernel


def fused_deep_tower(deep_in, wide, layers, w_out_row):
    """deep_in: (B, D0_pad) bf16.  wide: (B, 1) f32 (already includes the
    output-layer bias).  layers: list of (w_bf16, b_f32).  w_out_row: (1, Dlast_pad)."""
    B, d0 = deep_in.shape
    tile_b = 256 if B >= 256 else _round_up(max(B, 1), SUBLANE)
    b_pad = _round_up(B, tile_b)
    if b_pad != B:
        deep_in = jnp.pad(deep_in, ((0, b_pad - B), (0, 0)))
        wide = jnp.pad(wide, ((0, b_pad - B), (0, 0)))

    num_hidden = len(layers)
    grid = (b_pad // tile_b,)

    in_specs = [
        pl.BlockSpec((tile_b, d0), lambda i: (i, 0)),   # activations: batch-tiled
        pl.BlockSpec((tile_b, 1), lambda i: (i, 0)),    # wide logits
    ]
    flat_params = []
    for w, b in layers:
        # Constant index_map -> block never changes -> stays VMEM-resident.
        in_specs.append(pl.BlockSpec(w.shape, lambda i: (0, 0)))
        in_specs.append(pl.BlockSpec(b.shape, lambda i: (0, 0)))
        flat_params += [w, b]
    in_specs.append(pl.BlockSpec(w_out_row.shape, lambda i: (0, 0)))
    flat_params.append(w_out_row)

    out_specs = pl.BlockSpec((tile_b, 1), lambda i: (i, 0))

    # Explicit VMEM budget: resident params + double-buffered IO tiles +
    # headroom for live activations.  Clamped for v7x's smaller VMEM.
    param_bytes = sum(int(p.size) * p.dtype.itemsize for p in flat_params)
    max_dim = max([d0] + [w.shape[1] for w, _ in layers])
    io_bytes = 2 * (tile_b * d0 * 2 + 2 * tile_b * 4)
    act_bytes = 4 * tile_b * max_dim * 4
    vmem_limit = int(min(48 * 2**20,
                         max(16 * 2**20, 2 * (param_bytes + io_bytes + act_bytes))))

    out = pl.pallas_call(
        _make_fused_kernel(num_hidden),
        out_shape=jax.ShapeDtypeStruct((b_pad, 1), jnp.float32),
        grid=grid,
        in_specs=in_specs,
        out_specs=out_specs,
        compiler_params=pltpu.CompilerParams(
            dimension_semantics=("parallel",),     # shard batch tiles across TCs
            vmem_limit_bytes=vmem_limit),
    )(deep_in, wide, *flat_params)
    return out[:B]


# ----------------------------------------------------------------------------
# Parameters (torch-layout) + trace-time fold/pad into kernel-ready params.
# ----------------------------------------------------------------------------
def init_raw_params(key, field_dims, embed_dim, mlp_dims):
    vocab = int(sum(field_dims))
    num_fields = len(field_dims)
    params = {}

    key, k1, k2 = jax.random.split(key, 3)
    xav = float(np.sqrt(6.0 / (vocab + embed_dim)))
    params["embedding"] = jax.random.uniform(k1, (vocab, embed_dim), jnp.float32, -xav, xav)
    params["fc"] = 0.01 * jax.random.normal(k2, (vocab, 1), jnp.float32)
    params["wide_bias"] = jnp.zeros((1,), jnp.float32)
    params["offsets"] = jnp.asarray(
        np.concatenate([[0], np.cumsum(field_dims)[:-1]]), jnp.int32)

    layers = []
    in_dim = num_fields * embed_dim
    for out_dim in mlp_dims:
        key, kw, kb, kg, kbt, km, kv = jax.random.split(key, 7)
        bound = 1.0 / float(np.sqrt(in_dim))
        layers.append(dict(
            # stored as (in, out) == torch Linear weight (out, in) transposed
            w=jax.random.uniform(kw, (in_dim, out_dim), jnp.float32, -bound, bound),
            b=jax.random.uniform(kb, (1, out_dim), jnp.float32, -bound, bound),
            gamma=1.0 + 0.1 * jax.random.normal(kg, (1, out_dim), jnp.float32),
            beta=0.1 * jax.random.normal(kbt, (1, out_dim), jnp.float32),
            mean=0.1 * jax.random.normal(km, (1, out_dim), jnp.float32),
            var=jnp.abs(1.0 + 0.1 * jax.random.normal(kv, (1, out_dim), jnp.float32)),
        ))
        in_dim = out_dim
    params["mlp"] = layers

    key, kw, kb = jax.random.split(key, 3)
    bound = 1.0 / float(np.sqrt(in_dim))
    params["out_w"] = jax.random.uniform(kw, (in_dim, 1), jnp.float32, -bound, bound)
    params["out_b"] = jax.random.uniform(kb, (1, 1), jnp.float32, -bound, bound)
    return params


def prepare_kernel_params(raw):
    """Fold eval-BN into the hidden linears, zero-pad feature dims to 128-lane
    multiples, cast MXU operands to bf16, fold out-layer bias into the wide bias."""
    layers = []
    for l in raw["mlp"]:
        scale = l["gamma"] * jax.lax.rsqrt(l["var"] + BN_EPS)           # (1, out)
        w_fold = l["w"] * scale                                         # (in, out)
        b_fold = l["beta"] + (l["b"] - l["mean"]) * scale               # (1, out)
        in_dim, out_dim = l["w"].shape
        in_pad, out_pad = _round_up(in_dim, LANE), _round_up(out_dim, LANE)
        # Zero-padded lanes stay exactly 0 through bias + ReLU -> no pollution.
        w_pad = jnp.zeros((in_pad, out_pad), jnp.float32).at[:in_dim, :out_dim].set(w_fold)
        b_pad = jnp.zeros((1, out_pad), jnp.float32).at[:, :out_dim].set(b_fold)
        layers.append((w_pad.astype(COMPUTE_DTYPE), b_pad))

    last_dim = raw["out_w"].shape[0]
    last_pad = _round_up(last_dim, LANE)
    w_out_row = jnp.zeros((1, last_pad), jnp.float32).at[:, :last_dim].set(
        raw["out_w"][:, 0][None, :])

    return dict(
        embedding=raw["embedding"],
        fc=raw["fc"],
        offsets=raw["offsets"],
        wide_bias=raw["wide_bias"] + raw["out_b"][0],   # fold out-layer bias
        layers=layers,
        w_out_row=w_out_row,
    )


# ----------------------------------------------------------------------------
# Full Wide&Deep forward (gathers in XLA, deep tower in the fused kernel).
# ----------------------------------------------------------------------------
@jax.jit
def wide_and_deep_forward(x_idx, prep):
    idx = x_idx + prep["offsets"][None, :]                       # (B, F)
    B = x_idx.shape[0]

    emb = jnp.take(prep["embedding"], idx, axis=0)               # (B, F, E)
    deep_in = emb.reshape(B, -1)
    d0_pad = prep["layers"][0][0].shape[0]
    if d0_pad != deep_in.shape[1]:
        deep_in = jnp.pad(deep_in, ((0, 0), (0, d0_pad - deep_in.shape[1])))
    deep_in = deep_in.astype(COMPUTE_DTYPE)

    wide = jnp.sum(jnp.take(prep["fc"], idx, axis=0), axis=1)    # (B, 1)
    wide = (wide + prep["wide_bias"]).astype(jnp.float32)

    out = fused_deep_tower(deep_in, wide, prep["layers"], prep["w_out_row"])
    return out[:, 0]                                             # (B,)


# ----------------------------------------------------------------------------
# Pure-JAX f32 reference mirroring the torch module (eval mode).
# ----------------------------------------------------------------------------
def ref_forward(x_idx, raw):
    idx = x_idx + raw["offsets"][None, :]
    B = x_idx.shape[0]
    h = raw["embedding"][idx].reshape(B, -1)
    wide = jnp.sum(raw["fc"][idx], axis=1) + raw["wide_bias"]
    for l in raw["mlp"]:
        h = h @ l["w"] + l["b"]
        h = (h - l["mean"]) * jax.lax.rsqrt(l["var"] + BN_EPS) * l["gamma"] + l["beta"]
        h = jnp.maximum(h, 0.0)
    deep = h @ raw["out_w"] + raw["out_b"]
    return jax.nn.sigmoid((wide + deep)[:, 0])


# ----------------------------------------------------------------------------
if __name__ == "__main__":
    key = jax.random.PRNGKey(0)

    field_dims = (10, 7, 5)
    embed_dim = 8
    mlp_dims = (32, 16)
    dropout = 0.2          # inference mode -> identity
    batch = 8

    k_x, k_p = jax.random.split(key)
    raw = init_raw_params(k_p, field_dims, embed_dim, mlp_dims)

    field_keys = jax.random.split(k_x, len(field_dims))
    x_idx = jnp.stack(
        [jax.random.randint(field_keys[j], (batch,), 0, field_dims[j], dtype=jnp.int32)
         for j in range(len(field_dims))], axis=1)               # (B, F) indices

    prep = prepare_kernel_params(raw)

    out = wide_and_deep_forward(x_idx, prep)
    out = jax.block_until_ready(out)

    expected = ref_forward(x_idx, raw)
    assert out.shape == (batch,), out.shape
    tol = 2e-2 if COMPUTE_DTYPE == jnp.bfloat16 else 1e-5
    assert jnp.allclose(out, expected, atol=tol, rtol=tol), \
        float(jnp.max(jnp.abs(out - expected)))

    print("KERNEL_OK")
</pallas_src>

<mosaic_0001>
module attributes {stable_mosaic.version = 11 : i64} {
  func.func @kernel(%arg0: i32, %arg1: memref<8x128xbf16, #tpu.memory_space<vmem>>, %arg2: memref<8x1xf32, #tpu.memory_space<vmem>>, %arg3: memref<128x128xbf16, #tpu.memory_space<vmem>>, %arg4: memref<1x128xf32, #tpu.memory_space<vmem>>, %arg5: memref<128x128xbf16, #tpu.memory_space<vmem>>, %arg6: memref<1x128xf32, #tpu.memory_space<vmem>>, %arg7: memref<1x128xf32, #tpu.memory_space<vmem>>, %arg8: memref<8x1xf32, #tpu.memory_space<vmem>>) attributes {dimension_semantics = [#tpu.dimension_semantics<parallel>], iteration_bounds = array<i64: 1>, scalar_prefetch = 0 : i64, scratch_operands = 0 : i64, tpu.core_type = #tpu.core_type<tc>, window_params = [{transform_indices = @transform_0, window_bounds = array<i64: 8, 128>}, {transform_indices = @transform_1, window_bounds = array<i64: 8, 1>}, {pipeline_mode = #tpu.pipeline_mode<synchronous>, transform_indices = @transform_2, window_bounds = array<i64: 128, 128>}, {pipeline_mode = #tpu.pipeline_mode<synchronous>, transform_indices = @transform_3, window_bounds = array<i64: 1, 128>}, {pipeline_mode = #tpu.pipeline_mode<synchronous>, transform_indices = @transform_4, window_bounds = array<i64: 128, 128>}, {pipeline_mode = #tpu.pipeline_mode<synchronous>, transform_indices = @transform_5, window_bounds = array<i64: 1, 128>}, {pipeline_mode = #tpu.pipeline_mode<synchronous>, transform_indices = @transform_6, window_bounds = array<i64: 1, 128>}, {transform_indices = @transform_7, window_bounds = array<i64: 8, 1>}]} {
    %c0 = arith.constant 0 : index
    %c0_0 = arith.constant 0 : index
    %0 = vector.load %arg1[%c0, %c0_0] : memref<8x128xbf16, #tpu.memory_space<vmem>>, vector<8x128xbf16>
    %c0_1 = arith.constant 0 : index
    %c0_2 = arith.constant 0 : index
    %1 = vector.load %arg3[%c0_1, %c0_2] : memref<128x128xbf16, #tpu.memory_space<vmem>>, vector<128x128xbf16>
    %c0_3 = arith.constant 0 : index
    %c0_4 = arith.constant 0 : index
    %2 = vector.load %arg4[%c0_3, %c0_4] : memref<1x128xf32, #tpu.memory_space<vmem>>, vector<1x128xf32>
    %cst = arith.constant dense<0.000000e+00> : vector<8x128xf32>
    %3 = tpu.matmul %0, %1, %cst {dimension_numbers = #tpu.dot_dimension_numbers<[1], [0], [0], [1], [0, 0, 1, 1], [], []>} : vector<8x128xbf16>, vector<128x128xbf16>, vector<8x128xf32> -> vector<8x128xf32>
    %4 = vector.broadcast %2 : vector<1x128xf32> to vector<8x128xf32>
    %5 = arith.addf %3, %4 : vector<8x128xf32>
    %cst_5 = arith.constant 0.000000e+00 : f32
    %6 = vector.broadcast %cst_5 : f32 to vector<8x128xf32>
    %7 = arith.maximumf %5, %6 : vector<8x128xf32>
    %8 = arith.truncf %7 : vector<8x128xf32> to vector<8x128xbf16>
    %c0_6 = arith.constant 0 : index
    %c0_7 = arith.constant 0 : index
    %9 = vector.load %arg5[%c0_6, %c0_7] : memref<128x128xbf16, #tpu.memory_space<vmem>>, vector<128x128xbf16>
    %c0_8 = arith.constant 0 : index
    %c0_9 = arith.constant 0 : index
    %10 = vector.load %arg6[%c0_8, %c0_9] : memref<1x128xf32, #tpu.memory_space<vmem>>, vector<1x128xf32>
    %cst_10 = arith.constant dense<0.000000e+00> : vector<8x128xf32>
    %11 = tpu.matmul %8, %9, %cst_10 {dimension_numbers = #tpu.dot_dimension_numbers<[1], [0], [0], [1], [0, 0, 1, 1], [], []>} : vector<8x128xbf16>, vector<128x128xbf16>, vector<8x128xf32> -> vector<8x128xf32>
    %12 = vector.broadcast %10 : vector<1x128xf32> to vector<8x128xf32>
    %13 = arith.addf %11, %12 : vector<8x128xf32>
    %cst_11 = arith.constant 0.000000e+00 : f32
    %14 = vector.broadcast %cst_11 : f32 to vector<8x128xf32>
    %15 = arith.maximumf %13, %14 : vector<8x128xf32>
    %16 = arith.truncf %15 : vector<8x128xf32> to vector<8x128xbf16>
    %c0_12 = arith.constant 0 : index
    %c0_13 = arith.constant 0 : index
    %17 = vector.load %arg7[%c0_12, %c0_13] : memref<1x128xf32, #tpu.memory_space<vmem>>, vector<1x128xf32>
    %18 = arith.extf %16 : vector<8x128xbf16> to vector<8x128xf32>
    %19 = vector.broadcast %17 : vector<1x128xf32> to vector<8x128xf32>
    %20 = arith.mulf %18, %19 : vector<8x128xf32>
    %cst_14 = arith.constant dense<0.000000e+00> : vector<8xf32>
    %21 = vector.multi_reduction <add>, %20, %cst_14 [1] : vector<8x128xf32> to vector<8xf32>
    %22 = vector.shape_cast %21 : vector<8xf32> to vector<8x1xf32>
    %c0_15 = arith.constant 0 : index
    %c0_16 = arith.constant 0 : index
    %23 = vector.load %arg2[%c0_15, %c0_16] : memref<8x1xf32, #tpu.memory_space<vmem>>, vector<8x1xf32>
    %24 = arith.addf %22, %23 : vector<8x1xf32>
    %cst_17 = arith.constant 0.000000e+00 : f32
    %25 = vector.broadcast %cst_17 : f32 to vector<8x1xf32>
    %26 = arith.subf %25, %24 : vector<8x1xf32>
    %27 = math.exp %26 : vector<8x1xf32>
    %cst_18 = arith.constant 1.000000e+00 : f32
    %28 = vector.broadcast %cst_18 : f32 to vector<8x1xf32>
    %29 = arith.addf %28, %27 : vector<8x1xf32>
    %cst_19 = arith.constant 1.000000e+00 : f32
    %30 = vector.broadcast %cst_19 : f32 to vector<8x1xf32>
    %31 = arith.divf %30, %29 : vector<8x1xf32>
    %c0_20 = arith.constant 0 : index
    %c0_21 = arith.constant 0 : index
    %32 = vector.load %arg8[%c0_20, %c0_21] : memref<8x1xf32, #tpu.memory_space<vmem>>, vector<8x1xf32>
    tpu.vector_store %arg8[%c0_20, %c0_21], %31 {strides = array<i32>} : memref<8x1xf32, #tpu.memory_space<vmem>>, vector<8x1xf32>,
    return
  }
  func.func @transform_0(%arg0: i32) -> (i32, i32) {
    %c0_i32 = arith.constant 0 : i32
    %c0_i32_0 = arith.constant 0 : i32
    return %arg0, %c0_i32 : i32, i32
  }
  func.func @transform_1(%arg0: i32) -> (i32, i32) {
    %c0_i32 = arith.constant 0 : i32
    %c0_i32_0 = arith.constant 0 : i32
    return %arg0, %c0_i32 : i32, i32
  }
  func.func @transform_2(%arg0: i32) -> (i32, i32) {
    %c0_i32 = arith.constant 0 : i32
    %c0_i32_0 = arith.constant 0 : i32
    %c0_i32_1 = arith.constant 0 : i32
    return %c0_i32, %c0_i32_0 : i32, i32
  }
  func.func @transform_3(%arg0: i32) -> (i32, i32) {
    %c0_i32 = arith.constant 0 : i32
    %c0_i32_0 = arith.constant 0 : i32
    %c0_i32_1 = arith.constant 0 : i32
    return %c0_i32, %c0_i32_0 : i32, i32
  }
  func.func @transform_4(%arg0: i32) -> (i32, i32) {
    %c0_i32 = arith.constant 0 : i32
    %c0_i32_0 = arith.constant 0 : i32
    %c0_i32_1 = arith.constant 0 : i32
    return %c0_i32, %c0_i32_0 : i32, i32
  }
  func.func @transform_5(%arg0: i32) -> (i32, i32) {
    %c0_i32 = arith.constant 0 : i32
    %c0_i32_0 = arith.constant 0 : i32
    %c0_i32_1 = arith.constant 0 : i32
    return %c0_i32, %c0_i32_0 : i32, i32
  }
  func.func @transform_6(%arg0: i32) -> (i32, i32) {
    %c0_i32 = arith.constant 0 : i32
    %c0_i32_0 = arith.constant 0 : i32
    %c0_i32_1 = arith.constant 0 : i32
    return %c0_i32, %c0_i32_0 : i32, i32
  }
  func.func @transform_7(%arg0: i32) -> (i32, i32) {
    %c0_i32 = arith.constant 0 : i32
    %c0_i32_0 = arith.constant 0 : i32
    return %arg0, %c0_i32 : i32, i32
  }
}

</mosaic_0001>

<llo_original>
// kernel: wide_and_deep_forward.1
$region0: #{wide_and_deep_forward.1}
  #allocation0 [shape = 'u32[]', space=smem, size = 0x4, offset = 0x4, fixed_abs, tag = 'smem constant byte address 0x4 - core index']
  #allocation1 [shape = 'u32[144,128]{1,0:T(1,128)}', space=vmem, size = 0x12000, scoped, tag = 'internal scratch']
  %s0 = inlined_call_operand.vmem [shape: bf16[8,128], index: 0, kind: input, shape index: {}]
  %s1 = inlined_call_operand.vmem [shape: f32[8,1], index: 1, kind: input, shape index: {}]
  %s2 = inlined_call_operand.vmem [shape: bf16[128,128], index: 2, kind: input, shape index: {}]
  %s3 = inlined_call_operand.vmem [shape: f32[1,128], index: 3, kind: input, shape index: {}]
  %s4 = inlined_call_operand.vmem [shape: bf16[128,128], index: 4, kind: input, shape index: {}]
  %s5 = inlined_call_operand.vmem [shape: f32[1,128], index: 5, kind: input, shape index: {}]
  %s6 = inlined_call_operand.vmem [shape: f32[1,128], index: 6, kind: input, shape index: {}]
  %s7 = inlined_call_operand.vmem [shape: f32[8,1], index: 7, kind: output, shape index: {}]
  %s8 = sld [smem:[#allocation0]]
  $region38: #{wide_and_deep_forward.1} parent=0
    _
  %s10 = ssub.s32 1, %s8
  %s11 = scalar_select 0, %s10, %s8
  // Predicated region
  $region2: #{wide_and_deep_forward.1} parent=0 // pred_check
    _
  $region3: #{wide_and_deep_forward.1} parent=0 // pred_check_branch
    %13 = sbr.rel (0) target = $region5
  $region4: #{wide_and_deep_forward.1} parent=0 // pred_region
    _
  $region5: #{wide_and_deep_forward.1} parent=0 // pred_fallthru
    _
  // Predicated region
  $region6: #{wide_and_deep_forward.1} parent=0 // pred_check
    _
  $region7: #{wide_and_deep_forward.1} parent=0 // pred_check_branch
    %15 = sbr.rel (0) target = $region9
  $region8: #{wide_and_deep_forward.1} parent=0 // pred_region
    _
  $region9: #{wide_and_deep_forward.1} parent=0 // pred_fallthru
    _
  // Predicated region
  $region10: #{wide_and_deep_forward.1} parent=0 // pred_check
    _
  $region11: #{wide_and_deep_forward.1} parent=0 // pred_check_branch
    %17 = sbr.rel (0) target = $region13
  $region12: #{wide_and_deep_forward.1} parent=0 // pred_region
    _
  $region13: #{wide_and_deep_forward.1} parent=0 // pred_fallthru
    _
  // Predicated region
  $region14: #{wide_and_deep_forward.1} parent=0 // pred_check
    _
  $region15: #{wide_and_deep_forward.1} parent=0 // pred_check_branch
    %19 = sbr.rel (0) target = $region17
  $region16: #{wide_and_deep_forward.1} parent=0 // pred_region
    _
  $region17: #{wide_and_deep_forward.1} parent=0 // pred_fallthru
    _
  // Predicated region
  $region18: #{wide_and_deep_forward.1} parent=0 // pred_check
    _
  $region19: #{wide_and_deep_forward.1} parent=0 // pred_check_branch
    %21 = sbr.rel (0) target = $region21
  $region20: #{wide_and_deep_forward.1} parent=0 // pred_region
    _
  $region21: #{wide_and_deep_forward.1} parent=0 // pred_fallthru
    _
  // Predicated region
  $region22: #{wide_and_deep_forward.1} parent=0 // pred_check
    _
  $region23: #{wide_and_deep_forward.1} parent=0 // pred_check_branch
    %23 = sbr.rel (0) target = $region25
  $region24: #{wide_and_deep_forward.1} parent=0 // pred_region
    _
  $region25: #{wide_and_deep_forward.1} parent=0 // pred_fallthru
    _
  // Predicated region
  $region26: #{wide_and_deep_forward.1} parent=0 // pred_check
    _
  $region27: #{wide_and_deep_forward.1} parent=0 // pred_check_branch
    %25 = sbr.rel (0) target = $region29
  $region28: #{wide_and_deep_forward.1} parent=0 // pred_region
    _
  $region29: #{wide_and_deep_forward.1} parent=0 // pred_fallthru
    _
  %v27 = vld [vmem:[%s0] sm:$0xf]
  %v28 = vld [vmem:[%s2] sm:$0xf]
  %v29 = vld [vmem:[%s2 + $0x4] sm:$0xf]
  %v30 = vld [vmem:[%s2 + $0x8] sm:$0xf]
  %v31 = vld [vmem:[%s2 + $0xc] sm:$0xf]
  %v32 = vld [vmem:[%s2 + $0x10] sm:$0xf]
  %v33 = vld [vmem:[%s2 + $0x14] sm:$0xf]
  %v34 = vld [vmem:[%s2 + $0x18] sm:$0xf]
  %v35 = vld [vmem:[%s2 + $0x1c] sm:$0xf]
  %v36 = vld [vmem:[%s2 + $0x20] sm:$0xf]
  %v37 = vld [vmem:[%s2 + $0x24] sm:$0xf]
  %v38 = vld [vmem:[%s2 + $0x28] sm:$0xf]
  %v39 = vld [vmem:[%s2 + $0x2c] sm:$0xf]
  %v40 = vld [vmem:[%s2 + $0x30] sm:$0xf]
  %v41 = vld [vmem:[%s2 + $0x34] sm:$0xf]
  %v42 = vld [vmem:[%s2 + $0x38] sm:$0xf]
  %v43 = vld [vmem:[%s2 + $0x3c] sm:$0xf]
  %v44 = vld [vmem:[%s3] sm:$0x1]
  %v46 = vlaneseq
  %v47 = vshrl.u32 %v46, 7
  %v48 = vsub.s32 0, %v47
  %v49 = vrot.slane %v44, %v48
  %v67 = vunpack.c.l.b16 %v28
  %v68 = vunpack.c.l.b16 %v29
  %v69 = vunpack.c.l.b16 %v30
  %v70 = vunpack.c.l.b16 %v31
  %v71 = vunpack.c.l.b16 %v32
  %v72 = vunpack.c.l.b16 %v33
  %v73 = vunpack.c.l.b16 %v34
  %v74 = vunpack.c.l.b16 %v35
  %v75 = vunpack.c.l.b16 %v36
  %v76 = vunpack.c.l.b16 %v37
  %v77 = vunpack.c.l.b16 %v38
  %v78 = vunpack.c.l.b16 %v39
  %v79 = vunpack.c.l.b16 %v40
  %v80 = vunpack.c.l.b16 %v41
  %v81 = vunpack.c.l.b16 %v42
  %v82 = vunpack.c.l.b16 %v43
  %v83 = vpack.c.b16 %v68, %v67
  %v84 = vpack.c.b16 %v70, %v69
  %v85 = vpack.c.b16 %v72, %v71
  %v86 = vpack.c.b16 %v74, %v73
  %v87 = vpack.c.b16 %v76, %v75
  %v88 = vpack.c.b16 %v78, %v77
  %v89 = vpack.c.b16 %v80, %v79
  %v90 = vpack.c.b16 %v82, %v81
  %99 = vmatprep.subr.bf16.mxu0 0
  %100 = vmatpush1.bf16.msra.mxu0 %v90
  %101 = vmatprep.subr.bf16.mxu0 0
  %102 = vmatpush1.bf16.msra.mxu0 %v89
  %103 = vmatprep.subr.bf16.mxu0 0
  %104 = vmatpush1.bf16.msra.mxu0 %v88
  %105 = vmatprep.subr.bf16.mxu0 0
  %106 = vmatpush1.bf16.msra.mxu0 %v87
  %107 = vmatprep.subr.bf16.mxu0 0
  %108 = vmatpush1.bf16.msra.mxu0 %v86
  %109 = vmatprep.subr.bf16.mxu0 0
  %110 = vmatpush1.bf16.msra.mxu0 %v85
  %111 = vmatprep.subr.bf16.mxu0 0
  %112 = vmatpush1.bf16.msra.mxu0 %v84
  %113 = vmatprep.subr.bf16.mxu0 0
  %114 = vmatpush1.bf16.msra.mxu0 %v83
  %115 = vmatprep.subr.bf16.mxu0 0
  %116 = vmatpush2.bf16.msra.mxu0 0
  %117 = vmatprep.subr.bf16.mxu0 0
  %118 = vmatpush2.bf16.msra.mxu0 0
  %119 = vmatprep.subr.bf16.mxu0 0
  %120 = vmatpush2.bf16.msra.mxu0 0
  %121 = vmatprep.subr.bf16.mxu0 0
  %122 = vmatpush2.bf16.msra.mxu0 0
  %123 = vmatprep.subr.bf16.mxu0 0
  %124 = vmatpush2.bf16.msra.mxu0 0
  %125 = vmatprep.subr.bf16.mxu0 0
  %126 = vmatpush2.bf16.msra.mxu0 0
  %127 = vmatprep.subr.bf16.mxu0 0
  %128 = vmatpush2.bf16.msra.mxu0 0
  %129 = vmatprep.subr.bf16.mxu0 0
  %130 = vmatpush2.bf16.msra.mxu0 0
  %131 = vmatprep.mubr.bf16.mxu0 0
  %132 = vmatmul.mubr.bf16.gmra.mxu0 %v27
  %v133 = vpop.f32.mrf.mxu0
  %v134 = vadd.f32 %v49, %v133
  %v135 = vpop.f32.mrf.mxu0
  %v136 = vpop.f32.mrf.mxu0
  %v137 = vpop.f32.mrf.mxu0
  %138 = vdwg.mxu0
  %v139 = vmax.f32 %v134, 0.0
  %v140 = vpack.c.bf16 %v139, %v139
  %v141 = vld [vmem:[%s4] sm:$0xf]
  %v142 = vld [vmem:[%s4 + $0x4] sm:$0xf]
  %v143 = vld [vmem:[%s4 + $0x8] sm:$0xf]
  %v144 = vld [vmem:[%s4 + $0xc] sm:$0xf]
  %v145 = vld [vmem:[%s4 + $0x10] sm:$0xf]
  %v146 = vld [vmem:[%s4 + $0x14] sm:$0xf]
  %v147 = vld [vmem:[%s4 + $0x18] sm:$0xf]
  %v148 = vld [vmem:[%s4 + $0x1c] sm:$0xf]
  %v149 = vld [vmem:[%s4 + $0x20] sm:$0xf]
  %v150 = vld [vmem:[%s4 + $0x24] sm:$0xf]
  %v151 = vld [vmem:[%s4 + $0x28] sm:$0xf]
  %v152 = vld [vmem:[%s4 + $0x2c] sm:$0xf]
  %v153 = vld [vmem:[%s4 + $0x30] sm:$0xf]
  %v154 = vld [vmem:[%s4 + $0x34] sm:$0xf]
  %v155 = vld [vmem:[%s4 + $0x38] sm:$0xf]
  %v156 = vld [vmem:[%s4 + $0x3c] sm:$0xf]
  %v157 = vld [vmem:[%s5] sm:$0x1]
  %v159 = vlaneseq
  %v160 = vshrl.u32 %v159, 7
  %v161 = vsub.s32 0, %v160
  %v162 = vrot.slane %v157, %v161
  %v180 = vunpack.c.l.b16 %v141
  %v181 = vunpack.c.l.b16 %v142
  %v182 = vunpack.c.l.b16 %v143
  %v183 = vunpack.c.l.b16 %v144
  %v184 = vunpack.c.l.b16 %v145
  %v185 = vunpack.c.l.b16 %v146
  %v186 = vunpack.c.l.b16 %v147
  %v187 = vunpack.c.l.b16 %v148
  %v188 = vunpack.c.l.b16 %v149
  %v189 = vunpack.c.l.b16 %v150
  %v190 = vunpack.c.l.b16 %v151
  %v191 = vunpack.c.l.b16 %v152
  %v192 = vunpack.c.l.b16 %v153
  %v193 = vunpack.c.l.b16 %v154
  %v194 = vunpack.c.l.b16 %v155
  %v195 = vunpack.c.l.b16 %v156
  %v196 = vpack.c.b16 %v181, %v180
  %v197 = vpack.c.b16 %v183, %v182
  %v198 = vpack.c.b16 %v185, %v184
  %v199 = vpack.c.b16 %v187, %v186
  %v200 = vpack.c.b16 %v189, %v188
  %v201 = vpack.c.b16 %v191, %v190
  %v202 = vpack.c.b16 %v193, %v192
  %v203 = vpack.c.b16 %v195, %v194
  %212 = vmatprep.subr.bf16.mxu0 0
  %213 = vmatpush1.bf16.msra.mxu0 %v203
  %214 = vmatprep.subr.bf16.mxu0 0
  %215 = vmatpush1.bf16.msra.mxu0 %v202
  %216 = vmatprep.subr.bf16.mxu0 0
  %217 = vmatpush1.bf16.msra.mxu0 %v201
  %218 = vmatprep.subr.bf16.mxu0 0
  %219 = vmatpush1.bf16.msra.mxu0 %v200
  %220 = vmatprep.subr.bf16.mxu0 0
  %221 = vmatpush1.bf16.msra.mxu0 %v199
  %222 = vmatprep.subr.bf16.mxu0 0
  %223 = vmatpush1.bf16.msra.mxu0 %v198
  %224 = vmatprep.subr.bf16.mxu0 0
  %225 = vmatpush1.bf16.msra.mxu0 %v197
  %226 = vmatprep.subr.bf16.mxu0 0
  %227 = vmatpush1.bf16.msra.mxu0 %v196
  %228 = vmatprep.subr.bf16.mxu0 0
  %229 = vmatpush2.bf16.msra.mxu0 0
  %230 = vmatprep.subr.bf16.mxu0 0
  %231 = vmatpush2.bf16.msra.mxu0 0
  %232 = vmatprep.subr.bf16.mxu0 0
  %233 = vmatpush2.bf16.msra.mxu0 0
  %234 = vmatprep.subr.bf16.mxu0 0
  %235 = vmatpush2.bf16.msra.mxu0 0
  %236 = vmatprep.subr.bf16.mxu0 0
  %237 = vmatpush2.bf16.msra.mxu0 0
  %238 = vmatprep.subr.bf16.mxu0 0
  %239 = vmatpush2.bf16.msra.mxu0 0
  %240 = vmatprep.subr.bf16.mxu0 0
  %241 = vmatpush2.bf16.msra.mxu0 0
  %242 = vmatprep.subr.bf16.mxu0 0
  %243 = vmatpush2.bf16.msra.mxu0 0
  %244 = vmatprep.mubr.bf16.mxu0 0
  %245 = vmatmul.mubr.bf16.gmra.mxu0 %v140
  %v246 = vpop.f32.mrf.mxu0
  %v247 = vadd.f32 %v162, %v246
  %v248 = vpop.f32.mrf.mxu0
  %v249 = vpop.f32.mrf.mxu0
  %v250 = vpop.f32.mrf.mxu0
  %251 = vdwg.mxu0
  %v252 = vmax.f32 %v247, 0.0
  %v253 = vpack.c.bf16 %v252, %v252
  %v254 = vld [vmem:[%s6] sm:$0x1]
  %v255 = vunpack.c.l.bf16 %v253
  %v257 = vlaneseq
  %v258 = vshrl.u32 %v257, 7
  %v259 = vsub.s32 0, %v258
  %v260 = vrot.slane %v254, %v259
  %v262 = vmul.f32 %v255, %v260
  %263 = vadd.xlane.f32.xlu0 %v262
  %v264 = vpop.xlane.xlu0 %263
  %v265 = vld [vmem:[%s1] sm:$0xff]
  %v266 = vadd.f32 %v264, %v265
  %v267 = vsub.f32 0.0, %v266
  %v268 = vmul.f32 %v267, 1.442695
  %v269 = vpow.pop %v268
  %v270 = vadd.f32 %v269, 1.0
  %v271 = vrcp.pop %v270
  %v272 = vmul.f32 1.0, %v271
  %vm273 = vcmask 7168
  %274 = vst.msk [vmem:[%s7] sm:$0xff] %vm273, %v272
  // Predicated region
  $region30: #{wide_and_deep_forward.1} parent=0 // pred_check
    _
  $region31: #{wide_and_deep_forward.1} parent=0 // pred_check_branch
    %276 = sbr.rel (0) target = $region33
  $region32: #{wide_and_deep_forward.1} parent=0 // pred_region
    _
  $region33: #{wide_and_deep_forward.1} parent=0 // pred_fallthru
    _
  // Predicated region
  $region34: #{wide_and_deep_forward.1} parent=0 // pred_check
    _
  $region35: #{wide_and_deep_forward.1} parent=0 // pred_check_branch
    %278 = sbr.rel (0) target = $region37
  $region36: #{wide_and_deep_forward.1} parent=0 // pred_region
    _
  $region37: #{wide_and_deep_forward.1} parent=0 // pred_fallthru
    _

</llo_original>
